<compile_context>
chip_gen: v5e
topology: v5e:2x2
jax: 0.10.0
libtpu: 0.0.40
codegen_flags: <defaults>
</compile_context>

<pallas_src>
import functools

import jax
import jax.numpy as jnp
from jax import lax
from jax.experimental import pallas as pl
from jax.experimental.pallas import tpu as pltpu

EPS = 1e-5
_VMEM_LIMIT = 32 * 1024 * 1024


def _round_up(x, m):
    return (x + m - 1) // m * m


def _im2col_3x3_valid(x_nhwc):
    """(N,H,W,C) -> ((N*Ho*Wo, 9*C) tap-major / channel-minor patches, (N,Ho,Wo))."""
    n, h, w, c = x_nhwc.shape
    ho, wo = h - 2, w - 2
    taps = [x_nhwc[:, dy:dy + ho, dx:dx + wo, :]
            for dy in range(3) for dx in range(3)]
    patches = jnp.concatenate(taps, axis=-1)               # (N, Ho, Wo, 9*C)
    return patches.reshape(n * ho * wo, 9 * c), (n, ho, wo)


# --------------------------------------------------------------------------- #
# Kernel A: conv (single im2col matmul) + per-tile BN batch-stat partials.
# --------------------------------------------------------------------------- #
def _conv_stats_kernel(p_ref, w_ref, y_ref, s_ref, *, n_valid, tile_m):
    i = pl.program_id(0)
    # One MXU matmul per tile: (tile_m, 9*Cin) x (9*Cin, Cout), f32 accumulate.
    # NOTE: the conv bias is intentionally omitted -- training-mode BN cancels
    # any per-channel additive constant exactly.
    z = jnp.dot(p_ref[...], w_ref[...], preferred_element_type=jnp.float32)
    # Zero rows that only exist because M was padded to a tile multiple, so they
    # contribute nothing to the batch statistics.
    row = i * tile_m + lax.broadcasted_iota(jnp.int32, z.shape, 0)
    z = jnp.where(row < n_valid, z, 0.0)
    y_ref[...] = z
    # BN batch-stat partials, fused with the conv epilogue (single pass, f32).
    s = jnp.sum(z, axis=0, keepdims=True)                  # (1, C)
    sq = jnp.sum(z * z, axis=0, keepdims=True)             # (1, C)
    s_ref[...] = jnp.concatenate([s, sq], axis=0)[None]    # (1, 2, C)


# --------------------------------------------------------------------------- #
# Kernel B: BN(previous batch stats) + ReLU fused on the patch matrix, then the
#           next conv (single im2col matmul) + per-tile BN batch-stat partials.
# --------------------------------------------------------------------------- #
def _bn_relu_conv_stats_kernel(p_ref, s_in_ref, g_ref, b_ref, w_ref,
                               y_ref, s_ref, *,
                               n_prev, n_valid, tile_m, taps, cdtype):
    i = pl.program_id(0)
    # Per-channel affine from the previous layer's (sum, sumsq) batch stats.
    mean = s_in_ref[0:1, :] / n_prev                       # (1, C)
    var = s_in_ref[1:2, :] / n_prev - mean * mean          # biased variance
    scale = g_ref[...] * lax.rsqrt(var + EPS)              # (1, C)
    shift = b_ref[...] - mean * scale                      # (1, C)
    # Patch columns are tap-major / channel-minor, so the per-channel affine is
    # just tiled `taps` times along lanes.
    scale_t = jnp.tile(scale, (1, taps))                   # (1, taps*C)
    shift_t = jnp.tile(shift, (1, taps))

    x = p_ref[...].astype(jnp.float32)
    x = jnp.maximum(x * scale_t + shift_t, 0.0)            # BN + ReLU (f32, VPU)
    z = jnp.dot(x.astype(cdtype), w_ref[...],
                preferred_element_type=jnp.float32)        # MXU, f32 accumulate

    row = i * tile_m + lax.broadcasted_iota(jnp.int32, z.shape, 0)
    z = jnp.where(row < n_valid, z, 0.0)
    y_ref[...] = z
    s = jnp.sum(z, axis=0, keepdims=True)
    sq = jnp.sum(z * z, axis=0, keepdims=True)
    s_ref[...] = jnp.concatenate([s, sq], axis=0)[None]


# --------------------------------------------------------------------------- #
# Kernel C: final BN + ReLU on a lane-dense (rows, C*pack) repacked view.
# --------------------------------------------------------------------------- #
def _bn_relu_kernel(y_ref, s_ref, g_ref, b_ref, o_ref, *, n_prev, pack):
    mean = s_ref[0:1, :] / n_prev
    var = s_ref[1:2, :] / n_prev - mean * mean
    scale = g_ref[...] * lax.rsqrt(var + EPS)
    shift = b_ref[...] - mean * scale
    scale_t = jnp.tile(scale, (1, pack))                   # channel = lane % C
    shift_t = jnp.tile(shift, (1, pack))
    o_ref[...] = jnp.maximum(y_ref[...] * scale_t + shift_t, 0.0)


# --------------------------------------------------------------------------- #
# pallas_call wrappers
# --------------------------------------------------------------------------- #
def _compiler_params():
    return pltpu.CompilerParams(dimension_semantics=("parallel",),
                                vmem_limit_bytes=_VMEM_LIMIT)


def _conv_stats_call(patches, w, *, n_valid, tile_m):
    mp, k = patches.shape
    c = w.shape[1]
    g = mp // tile_m
    kern = functools.partial(_conv_stats_kernel, n_valid=n_valid, tile_m=tile_m)
    y, partial = pl.pallas_call(
        kern,
        grid=(g,),
        in_specs=[pl.BlockSpec((tile_m, k), lambda i: (i, 0)),
                  pl.BlockSpec((k, c), lambda i: (0, 0))],
        out_specs=(pl.BlockSpec((tile_m, c), lambda i: (i, 0)),
                   pl.BlockSpec((1, 2, c), lambda i: (i, 0, 0))),
        out_shape=(jax.ShapeDtypeStruct((mp, c), jnp.float32),
                   jax.ShapeDtypeStruct((g, 2, c), jnp.float32)),
        compiler_params=_compiler_params(),
        cost_estimate=pl.CostEstimate(
            flops=int(2 * mp * k * c + 4 * mp * c),
            transcendentals=0,
            bytes_accessed=int(patches.size * patches.dtype.itemsize
                               + w.size * w.dtype.itemsize + mp * c * 4)),
    )(patches, w)
    return y, jnp.sum(partial, axis=0)          # (2, C) global batch stats


def _bn_relu_conv_stats_call(patches, stats_in, gamma, beta, w, *,
                             n_prev, n_valid, tile_m, cdtype):
    mp, k = patches.shape
    c = w.shape[1]
    taps = k // c
    g = mp // tile_m
    kern = functools.partial(_bn_relu_conv_stats_kernel,
                             n_prev=float(n_prev), n_valid=n_valid,
                             tile_m=tile_m, taps=taps, cdtype=cdtype)
    y, partial = pl.pallas_call(
        kern,
        grid=(g,),
        in_specs=[pl.BlockSpec((tile_m, k), lambda i: (i, 0)),
                  pl.BlockSpec((2, c), lambda i: (0, 0)),
                  pl.BlockSpec((1, c), lambda i: (0, 0)),
                  pl.BlockSpec((1, c), lambda i: (0, 0)),
                  pl.BlockSpec((k, c), lambda i: (0, 0))],
        out_specs=(pl.BlockSpec((tile_m, c), lambda i: (i, 0)),
                   pl.BlockSpec((1, 2, c), lambda i: (i, 0, 0))),
        out_shape=(jax.ShapeDtypeStruct((mp, c), jnp.float32),
                   jax.ShapeDtypeStruct((g, 2, c), jnp.float32)),
        compiler_params=_compiler_params(),
        cost_estimate=pl.CostEstimate(
            flops=int(2 * mp * k * c + 3 * mp * k + 4 * mp * c),
            transcendentals=int(c),
            bytes_accessed=int(patches.size * patches.dtype.itemsize
                               + w.size * w.dtype.itemsize + mp * c * 4)),
    )(patches, stats_in, gamma, beta, w)
    return y, jnp.sum(partial, axis=0)


def _bn_relu_call(y_packed, stats_in, gamma, beta, *, n_prev, pack):
    r, l = y_packed.shape
    c = gamma.shape[-1]
    tile_r = min(512, r)
    g = pl.cdiv(r, tile_r)
    kern = functools.partial(_bn_relu_kernel, n_prev=float(n_prev), pack=pack)
    return pl.pallas_call(
        kern,
        grid=(g,),
        in_specs=[pl.BlockSpec((tile_r, l), lambda i: (i, 0)),
                  pl.BlockSpec((2, c), lambda i: (0, 0)),
                  pl.BlockSpec((1, c), lambda i: (0, 0)),
                  pl.BlockSpec((1, c), lambda i: (0, 0))],
        out_specs=pl.BlockSpec((tile_r, l), lambda i: (i, 0)),
        out_shape=jax.ShapeDtypeStruct((r, l), jnp.float32),
        compiler_params=_compiler_params(),
        cost_estimate=pl.CostEstimate(
            flops=int(3 * r * l),
            transcendentals=int(c),
            bytes_accessed=int(2 * r * l * 4)),
    )(y_packed, stats_in, gamma, beta)


# --------------------------------------------------------------------------- #
# Public forward
# --------------------------------------------------------------------------- #
def conv_block(x_nchw, params, *, compute_dtype=jnp.bfloat16, tile_m=256):
    """ConvBlock forward.  (N, Cin, H, W) f32 -> (N, Cout, H-4, W-4) f32."""
    n, cin, _h, _w = x_nchw.shape
    cout = params["w1"].shape[-1]

    x = jnp.transpose(x_nchw, (0, 2, 3, 1)).astype(jnp.float32)   # NHWC

    # ---- conv1: wrapper-side im2col (layout plumbing) + one MXU matmul ----
    p1, (_, h1, w1) = _im2col_3x3_valid(x)
    m1 = p1.shape[0]
    m1p = _round_up(m1, tile_m)
    p1 = jnp.pad(p1, ((0, m1p - m1), (0, 0))).astype(compute_dtype)
    w1k = params["w1"].reshape(9 * cin, cout).astype(compute_dtype)
    y1, stats1 = _conv_stats_call(p1, w1k, n_valid=m1, tile_m=tile_m)

    # ---- conv2: BN1(batch stats)+ReLU fused in-kernel on the patches + matmul
    y1 = y1[:m1].reshape(n, h1, w1, cout)
    p2, (_, h2, w2) = _im2col_3x3_valid(y1)
    m2 = p2.shape[0]
    m2p = _round_up(m2, tile_m)
    p2 = jnp.pad(p2, ((0, m2p - m2), (0, 0))).astype(compute_dtype)
    w2k = params["w2"].reshape(9 * cout, cout).astype(compute_dtype)
    y2, stats2 = _bn_relu_conv_stats_call(
        p2, stats1, params["g1"], params["be1"], w2k,
        n_prev=m1, n_valid=m2, tile_m=tile_m, cdtype=compute_dtype)

    # ---- BN2 + ReLU on a lane-dense repacked view (free row-major reinterpret)
    pack = 128 // cout if (128 % cout == 0 and m2p % (128 // cout) == 0) else 1
    y2p = y2.reshape(m2p // pack, cout * pack)
    outp = _bn_relu_call(y2p, stats2, params["g2"], params["be2"],
                         n_prev=m2, pack=pack)
    out = outp.reshape(-1)[: m2 * cout].reshape(n, h2, w2, cout)
    return jnp.transpose(out, (0, 3, 1, 2))     # NHWC -> NCHW


# --------------------------------------------------------------------------- #
# Params + pure-JAX reference (PyTorch training-mode semantics, incl. bias)
# --------------------------------------------------------------------------- #
def make_params(key, cin, cout):
    ks = jax.random.split(key, 8)
    w1 = 0.1 * jax.random.normal(ks[0], (3, 3, cin, cout), jnp.float32)
    b1 = 0.1 * jax.random.normal(ks[1], (1, cout), jnp.float32)
    g1 = 1.0 + 0.1 * jax.random.normal(ks[2], (1, cout), jnp.float32)
    be1 = 0.1 * jax.random.normal(ks[3], (1, cout), jnp.float32)
    w2 = 0.1 * jax.random.normal(ks[4], (3, 3, cout, cout), jnp.float32)
    b2 = 0.1 * jax.random.normal(ks[5], (1, cout), jnp.float32)
    g2 = 1.0 + 0.1 * jax.random.normal(ks[6], (1, cout), jnp.float32)
    be2 = 0.1 * jax.random.normal(ks[7], (1, cout), jnp.float32)
    # b1/b2 are used by the reference but not the kernels: training-mode BN
    # cancels per-channel additive biases exactly.
    return dict(w1=w1, b1=b1, g1=g1, be1=be1, w2=w2, b2=b2, g2=g2, be2=be2)


def reference(x_nchw, p):
    def conv(x, w_hwio, b):
        y = lax.conv_general_dilated(
            x, w_hwio, window_strides=(1, 1), padding="VALID",
            dimension_numbers=("NCHW", "HWIO", "NCHW"))
        return y + b.reshape(1, -1, 1, 1)

    def bn_relu(y, g, be):
        mean = jnp.mean(y, axis=(0, 2, 3), keepdims=True)
        var = jnp.mean((y - mean) ** 2, axis=(0, 2, 3), keepdims=True)
        y = (y - mean) * lax.rsqrt(var + EPS)
        y = y * g.reshape(1, -1, 1, 1) + be.reshape(1, -1, 1, 1)
        return jnp.maximum(y, 0.0)

    y = bn_relu(conv(x_nchw, p["w1"], p["b1"]), p["g1"], p["be1"])
    y = bn_relu(conv(y, p["w2"], p["b2"]), p["g2"], p["be2"])
    return y


if __name__ == "__main__":
    key = jax.random.PRNGKey(0)
    k_x, k_p = jax.random.split(key)

    N, Cin, H, W = 2, 4, 16, 16
    Cout = 8

    x = jax.random.normal(k_x, (N, Cin, H, W), jnp.float32)
    params = make_params(k_p, Cin, Cout)

    ref = jax.block_until_ready(reference(x, params))

    # f32 MXU path: tight check against the PyTorch-semantics reference.
    out_f32 = jax.block_until_ready(
        conv_block(x, params, compute_dtype=jnp.float32))
    assert out_f32.shape == (N, Cout, H - 4, W - 4), out_f32.shape
    assert jnp.allclose(out_f32, ref, rtol=2e-3, atol=2e-3), float(
        jnp.max(jnp.abs(out_f32 - ref)))

    # bf16 MXU path (native MXU dtype, f32 accumulation): bf16-level tolerance.
    out_bf16 = jax.block_until_ready(
        conv_block(x, params, compute_dtype=jnp.bfloat16))
    assert out_bf16.shape == (N, Cout, H - 4, W - 4), out_bf16.shape
    assert jnp.allclose(out_bf16, ref, rtol=5e-2, atol=5e-2), float(
        jnp.max(jnp.abs(out_bf16 - ref)))

    print("KERNEL_OK")
</pallas_src>

<mosaic_0001>
module attributes {stable_mosaic.version = 11 : i64} {
  func.func @_conv_stats_kernel(%arg0: i32, %arg1: memref<256x36xf32, #tpu.memory_space<vmem>>, %arg2: memref<36x8xf32, #tpu.memory_space<vmem>>, %arg3: memref<256x8xf32, #tpu.memory_space<vmem>>, %arg4: memref<1x2x8xf32, #tpu.memory_space<vmem>>) attributes {dimension_semantics = [#tpu.dimension_semantics<parallel>], iteration_bounds = array<i64: 2>, scalar_prefetch = 0 : i64, scratch_operands = 0 : i64, tpu.core_type = #tpu.core_type<tc>, window_params = [{transform_indices = @transform_0, window_bounds = array<i64: 256, 36>}, {pipeline_mode = #tpu.pipeline_mode<synchronous>, transform_indices = @transform_1, window_bounds = array<i64: 36, 8>}, {transform_indices = @transform_2, window_bounds = array<i64: 256, 8>}, {transform_indices = @transform_3, window_bounds = array<i64: 1, 2, 8>}]} {
    %c0 = arith.constant 0 : index
    %c0_0 = arith.constant 0 : index
    %0 = vector.load %arg1[%c0, %c0_0] : memref<256x36xf32, #tpu.memory_space<vmem>>, vector<256x36xf32>
    %c0_1 = arith.constant 0 : index
    %c0_2 = arith.constant 0 : index
    %1 = vector.load %arg2[%c0_1, %c0_2] : memref<36x8xf32, #tpu.memory_space<vmem>>, vector<36x8xf32>
    %cst = arith.constant dense<0.000000e+00> : vector<256x8xf32>
    %2 = tpu.matmul %0, %1, %cst {dimension_numbers = #tpu.dot_dimension_numbers<[1], [0], [0], [1], [0, 0, 1, 1], [], []>} : vector<256x36xf32>, vector<36x8xf32>, vector<256x8xf32> -> vector<256x8xf32>
    %c256_i32 = arith.constant 256 : i32
    %3 = arith.muli %arg0, %c256_i32 : i32
    %4 = tpu.iota {dimensions = array<i32: 0>} : vector<256x8xi32>
    %5 = vector.broadcast %3 : i32 to vector<256x8xi32>
    %6 = arith.addi %5, %4 : vector<256x8xi32>
    %c392_i32 = arith.constant 392 : i32
    %7 = vector.broadcast %c392_i32 : i32 to vector<256x8xi32>
    %8 = arith.cmpi slt, %6, %7 : vector<256x8xi32>
    %cst_3 = arith.constant 0.000000e+00 : f32
    %9 = vector.broadcast %cst_3 : f32 to vector<256x8xf32>
    %10 = arith.select %8, %2, %9 : vector<256x8xi1>, vector<256x8xf32>
    %c0_4 = arith.constant 0 : index
    %c0_5 = arith.constant 0 : index
    %11 = vector.load %arg3[%c0_4, %c0_5] : memref<256x8xf32, #tpu.memory_space<vmem>>, vector<256x8xf32>
    tpu.vector_store %arg3[%c0_4, %c0_5], %10 {strides = array<i32>} : memref<256x8xf32, #tpu.memory_space<vmem>>, vector<256x8xf32>,
    %cst_6 = arith.constant dense<0.000000e+00> : vector<8xf32>
    %12 = vector.multi_reduction <add>, %10, %cst_6 [0] : vector<256x8xf32> to vector<8xf32>
    %13 = vector.shape_cast %12 : vector<8xf32> to vector<1x8xf32>
    %14 = arith.mulf %10, %10 : vector<256x8xf32>
    %cst_7 = arith.constant dense<0.000000e+00> : vector<8xf32>
    %15 = vector.multi_reduction <add>, %14, %cst_7 [0] : vector<256x8xf32> to vector<8xf32>
    %16 = vector.shape_cast %15 : vector<8xf32> to vector<1x8xf32>
    %17 = tpu.concatenate %13, %16 in 0 : vector<1x8xf32>, vector<1x8xf32> -> vector<2x8xf32>
    %18 = vector.shape_cast %17 : vector<2x8xf32> to vector<1x2x8xf32>
    %c0_8 = arith.constant 0 : index
    %c0_9 = arith.constant 0 : index
    %c0_10 = arith.constant 0 : index
    %19 = vector.load %arg4[%c0_8, %c0_9, %c0_10] : memref<1x2x8xf32, #tpu.memory_space<vmem>>, vector<1x2x8xf32>
    tpu.vector_store %arg4[%c0_8, %c0_9, %c0_10], %18 {strides = array<i32>} : memref<1x2x8xf32, #tpu.memory_space<vmem>>, vector<1x2x8xf32>,
    return
  }
  func.func @transform_0(%arg0: i32) -> (i32, i32) {
    %c0_i32 = arith.constant 0 : i32
    %c0_i32_0 = arith.constant 0 : i32
    return %arg0, %c0_i32 : i32, i32
  }
  func.func @transform_1(%arg0: i32) -> (i32, i32) {
    %c0_i32 = arith.constant 0 : i32
    %c0_i32_0 = arith.constant 0 : i32
    %c0_i32_1 = arith.constant 0 : i32
    return %c0_i32, %c0_i32_0 : i32, i32
  }
  func.func @transform_2(%arg0: i32) -> (i32, i32) {
    %c0_i32 = arith.constant 0 : i32
    %c0_i32_0 = arith.constant 0 : i32
    return %arg0, %c0_i32 : i32, i32
  }
  func.func @transform_3(%arg0: i32) -> (i32, i32, i32) {
    %c0_i32 = arith.constant 0 : i32
    %c0_i32_0 = arith.constant 0 : i32
    %c0_i32_1 = arith.constant 0 : i32
    return %arg0, %c0_i32, %c0_i32_0 : i32, i32, i32
  }
}

</mosaic_0001>

<llo_original>
// kernel: tpu_custom_call.1
$region0: #{tpu_custom_call.1}
  #allocation0 [shape = 'u32[]', space=smem, size = 0x4, offset = 0x4, fixed_abs, tag = 'smem constant byte address 0x4 - core index']
  #allocation1 [shape = 'u32[72,128]{1,0:T(1,128)}', space=vmem, size = 0x9000, scoped, tag = 'internal scratch']
  %s0 = inlined_call_operand.vmem [shape: f32[512,36], index: 0, kind: input, shape index: {}]
  %s1 = inlined_call_operand.vmem [shape: f32[36,8], index: 1, kind: input, shape index: {}]
  %s2 = inlined_call_operand.vmem [shape: f32[512,8], index: 2, kind: output, shape index: {0}]
  %s3 = inlined_call_operand.hbm [shape: f32[2,2,8], index: 3, kind: output, shape index: {1}]
  %4 = xla_tuple %s2, %s3
  %s5 = sld [smem:[#allocation0]]
  $region49: #{tpu_custom_call.1} parent=0
    _
  %s7 = ssub.s32 1, %s5
  %s8 = scalar_select 0, %s7, %s5
  $region1: #{tpu_custom_call.1} parent=0
    #allocation2 [shape = 'u8[2048]{0}', space=vmem, size = 0x800, scoped, tag = 'output window, operand 1']
    #allocation3 [shape = 's32[2]{0}', space=sflag, size = 0x8, scoped, tag = 'scoped memory for tpu_custom_call.1']
    %9 = vsyncpa [#allocation3], 0
    %s10 = scalar_lea.sflag [#allocation3], 1
    %11 = vsyncpa %s10, 0
    loop: start=0, step=1, limit=4
    $region2: #{tpu_custom_call.1} parent=1 // loop_pre_header
      _
    $region3: #{tpu_custom_call.1} parent=1 // loop_header
      %s13 = sphi 0, %s17
      %p14 = scmp.ge.s32.totalorder %s13, 4
      %s23 = sphi 0, %s25
      %s26 = sphi 0, %s23
      %s27 = sphi 0, %s26
      %s43 = sphi 0, %s27
      %s47 = sphi 0, %s47
      %s49 = sphi 0, %s47
      %s50 = sphi 0, %s49
      %s64 = sphi 0, %s50
      %s70 = sphi 0, %s72
      %s73 = sphi 0, %s70
      %s74 = sphi 0, %s73
      %s90 = sphi 0, %s74
      %s96 = sphi 0, %s98
      %s99 = sphi 0, %s96
      %s100 = sphi 0, %s99
      %s116 = sphi 0, %s100
    $region4: #{tpu_custom_call.1} parent=1 // loop_header_branch
      %16 = sbr.rel (%p14) target = $region8
    $region5: #{tpu_custom_call.1} parent=1 // loop_body
      %s18 = ssub.s32 %s13, 1
      %s19 = ssub.s32 %s13, 2
      %s20 = sadd.s32 %s13, 1
      %s21 = ssub.s32 %s13, %s20
      %p22 = scmp.eq.s32.totalorder %s21, 0
      %s24 = sadd.s32 %s23, 1
      %s25 = scalar_select %p22, %s23, %s24
      %p28 = pneg %p22
      %p29 = scmp.eq.s32.totalorder %s13, 1
      %p30 = por %p28, %p29
      %p31 = scmp.ne.s32.totalorder %s23, %s26
      %p32 = scmp.eq.s32.totalorder %s13, 0
      %p33 = por %p31, %p32
      %p34 = scmp.ne.s32.totalorder %s23, %s26
      %p35 = scmp.eq.s32.totalorder %s18, 1
      %p36 = por %p34, %p35
      %p37 = scmp.ne.s32.totalorder %s26, %s27
      %p38 = scmp.eq.s32.totalorder %s18, 0
      %p39 = por %p37, %p38
      %p40 = scmp.ne.s32.totalorder %s26, %s27
      %p41 = scmp.eq.s32.totalorder %s19, 1
      %p42 = por %p40, %p41
      %p44 = scmp.ne.s32.totalorder %s27, %s43
      %p45 = scmp.eq.s32.totalorder %s19, 0
      %p46 = por %p44, %p45
      %s48 = sadd.s32 %s47, 1
      %p51 = scmp.eq.s32.totalorder %s13, 1
      %p52 = scmp.ne.s32.totalorder %s47, %s49
      %p53 = scmp.eq.s32.totalorder %s13, 0
      %p54 = por %p52, %p53
      %p55 = scmp.ne.s32.totalorder %s47, %s49
      %p56 = scmp.eq.s32.totalorder %s18, 1
      %p57 = por %p55, %p56
      %p58 = scmp.ne.s32.totalorder %s49, %s50
      %p59 = scmp.eq.s32.totalorder %s18, 0
      %p60 = por %p58, %p59
      %p61 = scmp.ne.s32.totalorder %s49, %s50
      %p62 = scmp.eq.s32.totalorder %s19, 1
      %p63 = por %p61, %p62
      %p65 = scmp.ne.s32.totalorder %s50, %s64
      %p66 = scmp.eq.s32.totalorder %s19, 0
      %p67 = por %p65, %p66
      %s68 = ssub.s32 %s13, %s20
      %p69 = scmp.eq.s32.totalorder %s68, 0
      %s71 = sadd.s32 %s70, 1
      %s72 = scalar_select %p69, %s70, %s71
      %p75 = pneg %p69
      %p76 = scmp.eq.s32.totalorder %s13, 1
      %p77 = por %p75, %p76
      %p78 = scmp.ne.s32.totalorder %s70, %s73
      %p79 = scmp.eq.s32.totalorder %s13, 0
      %p80 = por %p78, %p79
      %p81 = scmp.ne.s32.totalorder %s70, %s73
      %p82 = scmp.eq.s32.totalorder %s18, 1
      %p83 = por %p81, %p82
      %p84 = scmp.ne.s32.totalorder %s73, %s74
      %p85 = scmp.eq.s32.totalorder %s18, 0
      %p86 = por %p84, %p85
      %p87 = scmp.ne.s32.totalorder %s73, %s74
      %p88 = scmp.eq.s32.totalorder %s19, 1
      %p89 = por %p87, %p88
      %p91 = scmp.ne.s32.totalorder %s74, %s90
      %p92 = scmp.eq.s32.totalorder %s19, 0
      %p93 = por %p91, %p92
      %s94 = ssub.s32 %s13, %s20
      %p95 = scmp.eq.s32.totalorder %s94, 0
      %s97 = sadd.s32 %s96, 1
      %s98 = scalar_select %p95, %s96, %s97
      %p101 = pneg %p95
      %p102 = scmp.eq.s32.totalorder %s13, 1
      %p103 = por %p101, %p102
      %p104 = scmp.ne.s32.totalorder %s96, %s99
      %p105 = scmp.eq.s32.totalorder %s13, 0
      %p106 = por %p104, %p105
      %p107 = scmp.ne.s32.totalorder %s96, %s99
      %p108 = scmp.eq.s32.totalorder %s18, 1
      %p109 = por %p107, %p108
      %p110 = scmp.ne.s32.totalorder %s99, %s100
      %p111 = scmp.eq.s32.totalorder %s18, 0
      %p112 = por %p110, %p111
      %p113 = scmp.ne.s32.totalorder %s99, %s100
      %p114 = scmp.eq.s32.totalorder %s19, 1
      %p115 = por %p113, %p114
      %p117 = scmp.ne.s32.totalorder %s100, %s116
      %p118 = scmp.eq.s32.totalorder %s19, 0
      %p119 = por %p117, %p118
      %p120 = scmp.le.s32.totalorder 1, %s13
      %p121 = scmp.lt.s32.totalorder %s13, 3
      %p122 = pnand %p120, %p121
      %p123 = pneg %p122
      // Predicated region
      $region9: #{tpu_custom_call.1} parent=5 // pred_check
        _
      $region10: #{tpu_custom_call.1} parent=5 // pred_check_branch
        %125 = sbr.rel (%p122) target = $region12
      $region11: #{tpu_custom_call.1} parent=5 // pred_region
        %s126 = ssub.s32 %s13, 1
        // Predicated region
        $region13: #{tpu_custom_call.1} parent=11 // pred_check
          %p127 = pneg %p60
        $region14: #{tpu_custom_call.1} parent=11 // pred_check_branch
          %129 = sbr.rel (%p127) target = $region16
        $region15: #{tpu_custom_call.1} parent=11 // pred_region
          _
        $region16: #{tpu_custom_call.1} parent=11 // pred_fallthru
          _
      $region12: #{tpu_custom_call.1} parent=5 // pred_fallthru
        _
      %p130 = scmp.lt.s32.totalorder %s13, 2
      // Predicated region
      $region17: #{tpu_custom_call.1} parent=5 // pred_check
        %p131 = pneg %p130
      $region18: #{tpu_custom_call.1} parent=5 // pred_check_branch
        %133 = sbr.rel (%p131) target = $region20
      $region19: #{tpu_custom_call.1} parent=5 // pred_region
        // Predicated region
        $region21: #{tpu_custom_call.1} parent=19 // pred_check
          %p134 = pneg %p33
        $region22: #{tpu_custom_call.1} parent=19 // pred_check_branch
          %136 = sbr.rel (%p134) target = $region24
        $region23: #{tpu_custom_call.1} parent=19 // pred_region
          %s137 = smul.u32 32, %s13
          %p138 = scmp.lt.s32.totalorder %s137, 63
          %s139 = scalar_select %p138, %s137, 63
          %s140 = smul.addr %s139, 8
          %s141 = scalar_lea.vmem %s0, %s140
          %s142 = smul.u32 32, %s13
        $region24: #{tpu_custom_call.1} parent=19 // pred_fallthru
          _
      $region20: #{tpu_custom_call.1} parent=5 // pred_fallthru
        _
      %p143 = scmp.le.s32.totalorder 1, %s13
      %p144 = scmp.lt.s32.totalorder %s13, 3
      %p145 = pnand %p143, %p144
      %p146 = pneg %p145
      // Predicated region
      $region25: #{tpu_custom_call.1} parent=5 // pred_check
        _
      $region26: #{tpu_custom_call.1} parent=5 // pred_check_branch
        %148 = sbr.rel (%p145) target = $region28
      $region27: #{tpu_custom_call.1} parent=5 // pred_region
        %s149 = ssub.s32 %s13, 1
        %s150 = smul.u32 32, %s18
        %p151 = scmp.lt.s32.totalorder %s150, 63
        %s152 = scalar_select %p151, %s150, 63
        %s153 = smul.addr %s152, 8
        %s154 = scalar_lea.vmem %s0, %s153
        %p155 = pneg %p39
        %p156 = pneg %p36
        %p157 = pneg %p60
        %p158 = pneg %p57
        %p159 = pneg %p86
        %p160 = pneg %p83
        %s161 = smul.u32 32, %s18
        %p162 = scmp.lt.s32.totalorder %s161, 63
        %s163 = scalar_select %p162, %s161, 63
        %s164 = smul.addr %s163, 8
        %s165 = scalar_lea.vmem %s2, %s164
        %p166 = pneg %p112
        %p167 = pneg %p109
        %s168 = sand.u32 %s99, 1
        %s169 = scalar_lea.sflag [#allocation3], %s168
        %s170 = sand.u32 %s99, 1
        %s171 = smul.addr %s170, 2
        %s172 = scalar_lea.vmem [#allocation2], %s171
        %s173 = smul.u32 32, %s18
        %p174 = scmp.lt.s32.totalorder %s173, 63
        %s175 = scalar_select %p174, %s173, 63
        %s176 = smul.addr %s175, 8
        %s177 = scalar_lea.vmem %s0, %s176
        %s178 = smul.u32 32, %s18
        %s179 = smul.u32 32, %s18
        %p180 = scmp.lt.s32.totalorder %s179, 63
        %s181 = scalar_select %p180, %s179, 63
        %s182 = smul.addr %s181, 8
        %s183 = scalar_lea.vmem %s2, %s182
        %s184 = smul.u32 32, %s18
        %v185 = vld [vmem:[%s177] sm:$0xff]
        %v186 = vld [vmem:[%s177 + $0x8] sm:$0xff]
        %v187 = vld [vmem:[%s177 + $0x10] sm:$0xff]
        %v188 = vld [vmem:[%s177 + $0x18] sm:$0xff]
        %v189 = vld [vmem:[%s177 + $0x20] sm:$0xff]
        %v190 = vld [vmem:[%s177 + $0x28] sm:$0xff]
        %v191 = vld [vmem:[%s177 + $0x30] sm:$0xff]
        %v192 = vld [vmem:[%s177 + $0x38] sm:$0xff]
        %v193 = vld [vmem:[%s177 + $0x40] sm:$0xff]
        %v194 = vld [vmem:[%s177 + $0x48] sm:$0xff]
        %v195 = vld [vmem:[%s177 + $0x50] sm:$0xff]
        %v196 = vld [vmem:[%s177 + $0x58] sm:$0xff]
        %v197 = vld [vmem:[%s177 + $0x60] sm:$0xff]
        %v198 = vld [vmem:[%s177 + $0x68] sm:$0xff]
        %v199 = vld [vmem:[%s177 + $0x70] sm:$0xff]
        %v200 = vld [vmem:[%s177 + $0x78] sm:$0xff]
        %v201 = vld [vmem:[%s177 + $0x80] sm:$0xff]
        %v202 = vld [vmem:[%s177 + $0x88] sm:$0xff]
        %v203 = vld [vmem:[%s177 + $0x90] sm:$0xff]
        %v204 = vld [vmem:[%s177 + $0x98] sm:$0xff]
        %v205 = vld [vmem:[%s177 + $0xa0] sm:$0xff]
        %v206 = vld [vmem:[%s177 + $0xa8] sm:$0xff]
        %v207 = vld [vmem:[%s177 + $0xb0] sm:$0xff]
        %v208 = vld [vmem:[%s177 + $0xb8] sm:$0xff]
        %v209 = vld [vmem:[%s177 + $0xc0] sm:$0xff]
        %v210 = vld [vmem:[%s177 + $0xc8] sm:$0xff]
        %v211 = vld [vmem:[%s177 + $0xd0] sm:$0xff]
        %v212 = vld [vmem:[%s177 + $0xd8] sm:$0xff]
        %v213 = vld [vmem:[%s177 + $0xe0] sm:$0xff]
        %v214 = vld [vmem:[%s177 + $0xe8] sm:$0xff]
        %v215 = vld [vmem:[%s177 + $0xf0] sm:$0xff]
        %v216 = vld [vmem:[%s177 + $0xf8] sm:$0xff]
        %v217 = vld [vmem:[%s1] sm:$0xff]
        %v218 = vld [vmem:[%s1 + $0x8] sm:$0xff]
        %v219 = vld [vmem:[%s1 + $0x10] sm:$0xff]
        %v220 = vld [vmem:[%s1 + $0x18] sm:$0xff]
        %v221 = vld [vmem:[%s1 + $0x20] sm:$0xf]
        %vm222 = vcmask 293888
        %v224 = vsel %vm222, %v185, 0
        %v227 = vsel %vm222, %v186, 0
        %v230 = vsel %vm222, %v187, 0
        %v233 = vsel %vm222, %v188, 0
        %v236 = vsel %vm222, %v189, 0
        %v239 = vsel %vm222, %v190, 0
        %v242 = vsel %vm222, %v191, 0
        %v245 = vsel %vm222, %v192, 0
        %v248 = vsel %vm222, %v193, 0
        %v251 = vsel %vm222, %v194, 0
        %v254 = vsel %vm222, %v195, 0
        %v257 = vsel %vm222, %v196, 0
        %v260 = vsel %vm222, %v197, 0
        %v263 = vsel %vm222, %v198, 0
        %v266 = vsel %vm222, %v199, 0
        %v269 = vsel %vm222, %v200, 0
        %v272 = vsel %vm222, %v201, 0
        %v275 = vsel %vm222, %v202, 0
        %v278 = vsel %vm222, %v203, 0
        %v281 = vsel %vm222, %v204, 0
        %v284 = vsel %vm222, %v205, 0
        %v287 = vsel %vm222, %v206, 0
        %v290 = vsel %vm222, %v207, 0
        %v293 = vsel %vm222, %v208, 0
        %v296 = vsel %vm222, %v209, 0
        %v299 = vsel %vm222, %v210, 0
        %v302 = vsel %vm222, %v211, 0
        %v305 = vsel %vm222, %v212, 0
        %v308 = vsel %vm222, %v213, 0
        %v311 = vsel %vm222, %v214, 0
        %v314 = vsel %vm222, %v215, 0
        %v317 = vsel %vm222, %v216, 0
        %vm319 = vcmask 1043456
        %v321 = vsel %vm319, %v221, 0
        %323 = vmatpush.msra.mxu0 0.0
        %324 = vmatpush.msra.mxu0 0.0
        %325 = vmatpush.msra.mxu0 0.0
        %326 = vmatpush.msra.mxu0 0.0
        %327 = vmatpush.msra.mxu0 0.0
        %328 = vmatpush.msra.mxu0 0.0
        %329 = vmatpush.msra.mxu0 0.0
        %330 = vmatpush.msra.mxu0 0.0
        %331 = vmatpush.msra.mxu0 0.0
        %332 = vmatpush.msra.mxu0 0.0
        %333 = vmatpush.msra.mxu0 0.0
        %334 = vmatpush.msra.mxu0 %v321
        %335 = vmatpush.msra.mxu0 %v220
        %336 = vmatpush.msra.mxu0 %v219
        %337 = vmatpush.msra.mxu0 %v218
        %338 = vmatpush.msra.mxu0 %v217
        %339 = vmatmul.f32.gmra.mxu0 %v224
        %v340 = vpop.f32.mrf.mxu0
        %v341 = vadd.f32 0.0, %v340
        %342 = vmatmul.f32.gmra.mxu0 %v227
        %v343 = vpop.f32.mrf.mxu0
        %v344 = vadd.f32 0.0, %v343
        %345 = vmatmul.f32.gmra.mxu0 %v230
        %v346 = vpop.f32.mrf.mxu0
        %v347 = vadd.f32 0.0, %v346
        %348 = vmatmul.f32.gmra.mxu0 %v233
        %v349 = vpop.f32.mrf.mxu0
        %v350 = vadd.f32 0.0, %v349
        %351 = vmatmul.f32.gmra.mxu0 %v236
        %v352 = vpop.f32.mrf.mxu0
        %v353 = vadd.f32 0.0, %v352
        %354 = vmatmul.f32.gmra.mxu0 %v239
        %v355 = vpop.f32.mrf.mxu0
        %v356 = vadd.f32 0.0, %v355
        %357 = vmatmul.f32.gmra.mxu0 %v242
        %v358 = vpop.f32.mrf.mxu0
        %v359 = vadd.f32 0.0, %v358
        %360 = vmatmul.f32.gmra.mxu0 %v245
        %v361 = vpop.f32.mrf.mxu0
        %v362 = vadd.f32 0.0, %v361
        %363 = vmatmul.f32.gmra.mxu0 %v248
        %v364 = vpop.f32.mrf.mxu0
        %v365 = vadd.f32 0.0, %v364
        %366 = vmatmul.f32.gmra.mxu0 %v251
        %v367 = vpop.f32.mrf.mxu0
        %v368 = vadd.f32 0.0, %v367
        %369 = vmatmul.f32.gmra.mxu0 %v254
        %v370 = vpop.f32.mrf.mxu0
        %v371 = vadd.f32 0.0, %v370
        %372 = vmatmul.f32.gmra.mxu0 %v257
        %v373 = vpop.f32.mrf.mxu0
        %v374 = vadd.f32 0.0, %v373
        %375 = vmatmul.f32.gmra.mxu0 %v260
        %v376 = vpop.f32.mrf.mxu0
        %v377 = vadd.f32 0.0, %v376
        %378 = vmatmul.f32.gmra.mxu0 %v263
        %v379 = vpop.f32.mrf.mxu0
        %v380 = vadd.f32 0.0, %v379
        %381 = vmatmul.f32.gmra.mxu0 %v266
        %v382 = vpop.f32.mrf.mxu0
        %v383 = vadd.f32 0.0, %v382
        %384 = vmatmul.f32.gmra.mxu0 %v269
        %v385 = vpop.f32.mrf.mxu0
        %v386 = vadd.f32 0.0, %v385
        %387 = vmatmul.f32.gmra.mxu0 %v272
        %v388 = vpop.f32.mrf.mxu0
        %v389 = vadd.f32 0.0, %v388
        %390 = vmatmul.f32.gmra.mxu0 %v275
        %v391 = vpop.f32.mrf.mxu0
        %v392 = vadd.f32 0.0, %v391
        %393 = vmatmul.f32.gmra.mxu0 %v278
        %v394 = vpop.f32.mrf.mxu0
        %v395 = vadd.f32 0.0, %v394
        %396 = vmatmul.f32.gmra.mxu0 %v281
        %v397 = vpop.f32.mrf.mxu0
        %v398 = vadd.f32 0.0, %v397
        %399 = vmatmul.f32.gmra.mxu0 %v284
        %v400 = vpop.f32.mrf.mxu0
        %v401 = vadd.f32 0.0, %v400
        %402 = vmatmul.f32.gmra.mxu0 %v287
        %v403 = vpop.f32.mrf.mxu0
        %v404 = vadd.f32 0.0, %v403
        %405 = vmatmul.f32.gmra.mxu0 %v290
        %v406 = vpop.f32.mrf.mxu0
        %v407 = vadd.f32 0.0, %v406
        %408 = vmatmul.f32.gmra.mxu0 %v293
        %v409 = vpop.f32.mrf.mxu0
        %v410 = vadd.f32 0.0, %v409
        %411 = vmatmul.f32.gmra.mxu0 %v296
        %v412 = vpop.f32.mrf.mxu0
        %v413 = vadd.f32 0.0, %v412
        %414 = vmatmul.f32.gmra.mxu0 %v299
        %v415 = vpop.f32.mrf.mxu0
        %v416 = vadd.f32 0.0, %v415
        %417 = vmatmul.f32.gmra.mxu0 %v302
        %v418 = vpop.f32.mrf.mxu0
        %v419 = vadd.f32 0.0, %v418
        %420 = vmatmul.f32.gmra.mxu0 %v305
        %v421 = vpop.f32.mrf.mxu0
        %v422 = vadd.f32 0.0, %v421
        %423 = vmatmul.f32.gmra.mxu0 %v308
        %v424 = vpop.f32.mrf.mxu0
        %v425 = vadd.f32 0.0, %v424
        %426 = vmatmul.f32.gmra.mxu0 %v311
        %v427 = vpop.f32.mrf.mxu0
        %v428 = vadd.f32 0.0, %v427
        %429 = vmatmul.f32.gmra.mxu0 %v314
        %v430 = vpop.f32.mrf.mxu0
        %v431 = vadd.f32 0.0, %v430
        %432 = vmatmul.f32.gmra.mxu0 %v317
        %v433 = vpop.f32.mrf.mxu0
        %v434 = vadd.f32 0.0, %v433
        %435 = vdwg.mxu0
        %s436 = smul.u32 %s18, 256
        %v437 = vlaneseq
        %v438 = vshrl.u32 %v437, 7
        %v439 = vadd.s32 %v438, 8
        %v440 = vadd.s32 %v438, 16
        %v441 = vadd.s32 %v438, 24
        %v442 = vadd.s32 %v438, 32
        %v443 = vadd.s32 %v438, 40
        %v444 = vadd.s32 %v438, 48
        %v445 = vadd.s32 %v438, 56
        %v446 = vadd.s32 %v438, 64
        %v447 = vadd.s32 %v438, 72
        %v448 = vadd.s32 %v438, 80
        %v449 = vadd.s32 %v438, 88
        %v450 = vadd.s32 %v438, 96
        %v451 = vadd.s32 %v438, 104
        %v452 = vadd.s32 %v438, 112
        %v453 = vadd.s32 %v438, 120
        %v454 = vadd.s32 %v438, 128
        %v455 = vadd.s32 %v438, 136
        %v456 = vadd.s32 %v438, 144
        %v457 = vadd.s32 %v438, 152
        %v458 = vadd.s32 %v438, 160
        %v459 = vadd.s32 %v438, 168
        %v460 = vadd.s32 %v438, 176
        %v461 = vadd.s32 %v438, 184
        %v462 = vadd.s32 %v438, 192
        %v463 = vadd.s32 %v438, 200
        %v464 = vadd.s32 %v438, 208
        %v465 = vadd.s32 %v438, 216
        %v466 = vadd.s32 %v438, 224
        %v467 = vadd.s32 %v438, 232
        %v468 = vadd.s32 %v438, 240
        %v469 = vadd.s32 %v438, 248
        %v470 = vstv %s436
        %v471 = vadd.s32 %v470, %v438
        %v472 = vadd.s32 %v470, %v439
        %v473 = vadd.s32 %v470, %v440
        %v474 = vadd.s32 %v470, %v441
        %v475 = vadd.s32 %v470, %v442
        %v476 = vadd.s32 %v470, %v443
        %v477 = vadd.s32 %v470, %v444
        %v478 = vadd.s32 %v470, %v445
        %v479 = vadd.s32 %v470, %v446
        %v480 = vadd.s32 %v470, %v447
        %v481 = vadd.s32 %v470, %v448
        %v482 = vadd.s32 %v470, %v449
        %v483 = vadd.s32 %v470, %v450
        %v484 = vadd.s32 %v470, %v451
        %v485 = vadd.s32 %v470, %v452
        %v486 = vadd.s32 %v470, %v453
        %v487 = vadd.s32 %v470, %v454
        %v488 = vadd.s32 %v470, %v455
        %v489 = vadd.s32 %v470, %v456
        %v490 = vadd.s32 %v470, %v457
        %v491 = vadd.s32 %v470, %v458
        %v492 = vadd.s32 %v470, %v459
        %v493 = vadd.s32 %v470, %v460
        %v494 = vadd.s32 %v470, %v461
        %v495 = vadd.s32 %v470, %v462
        %v496 = vadd.s32 %v470, %v463
        %v497 = vadd.s32 %v470, %v464
        %v498 = vadd.s32 %v470, %v465
        %v499 = vadd.s32 %v470, %v466
        %v500 = vadd.s32 %v470, %v467
        %v501 = vadd.s32 %v470, %v468
        %v502 = vadd.s32 %v470, %v469
        %vm503 = vcmp.lt.s32.totalorder %v471, 392
        %vm504 = vcmp.lt.s32.totalorder %v472, 392
        %vm505 = vcmp.lt.s32.totalorder %v473, 392
        %vm506 = vcmp.lt.s32.totalorder %v474, 392
        %vm507 = vcmp.lt.s32.totalorder %v475, 392
        %vm508 = vcmp.lt.s32.totalorder %v476, 392
        %vm509 = vcmp.lt.s32.totalorder %v477, 392
        %vm510 = vcmp.lt.s32.totalorder %v478, 392
        %vm511 = vcmp.lt.s32.totalorder %v479, 392
        %vm512 = vcmp.lt.s32.totalorder %v480, 392
        %vm513 = vcmp.lt.s32.totalorder %v481, 392
        %vm514 = vcmp.lt.s32.totalorder %v482, 392
        %vm515 = vcmp.lt.s32.totalorder %v483, 392
        %vm516 = vcmp.lt.s32.totalorder %v484, 392
        %vm517 = vcmp.lt.s32.totalorder %v485, 392
        %vm518 = vcmp.lt.s32.totalorder %v486, 392
        %vm519 = vcmp.lt.s32.totalorder %v487, 392
        %vm520 = vcmp.lt.s32.totalorder %v488, 392
        %vm521 = vcmp.lt.s32.totalorder %v489, 392
        %vm522 = vcmp.lt.s32.totalorder %v490, 392
        %vm523 = vcmp.lt.s32.totalorder %v491, 392
        %vm524 = vcmp.lt.s32.totalorder %v492, 392
        %vm525 = vcmp.lt.s32.totalorder %v493, 392
        %vm526 = vcmp.lt.s32.totalorder %v494, 392
        %vm527 = vcmp.lt.s32.totalorder %v495, 392
        %vm528 = vcmp.lt.s32.totalorder %v496, 392
        %vm529 = vcmp.lt.s32.totalorder %v497, 392
        %vm530 = vcmp.lt.s32.totalorder %v498, 392
        %vm531 = vcmp.lt.s32.totalorder %v499, 392
        %vm532 = vcmp.lt.s32.totalorder %v500, 392
        %vm533 = vcmp.lt.s32.totalorder %v501, 392
        %vm534 = vcmp.lt.s32.totalorder %v502, 392
        %v535 = vsel %vm503, %v341, 0.0
        %v536 = vsel %vm504, %v344, 0.0
        %v537 = vsel %vm505, %v347, 0.0
        %v538 = vsel %vm506, %v350, 0.0
        %v539 = vsel %vm507, %v353, 0.0
        %v540 = vsel %vm508, %v356, 0.0
        %v541 = vsel %vm509, %v359, 0.0
        %v542 = vsel %vm510, %v362, 0.0
        %v543 = vsel %vm511, %v365, 0.0
        %v544 = vsel %vm512, %v368, 0.0
        %v545 = vsel %vm513, %v371, 0.0
        %v546 = vsel %vm514, %v374, 0.0
        %v547 = vsel %vm515, %v377, 0.0
        %v548 = vsel %vm516, %v380, 0.0
        %v549 = vsel %vm517, %v383, 0.0
        %v550 = vsel %vm518, %v386, 0.0
        %v551 = vsel %vm519, %v389, 0.0
        %v552 = vsel %vm520, %v392, 0.0
        %v553 = vsel %vm521, %v395, 0.0
        %v554 = vsel %vm522, %v398, 0.0
        %v555 = vsel %vm523, %v401, 0.0
        %v556 = vsel %vm524, %v404, 0.0
        %v557 = vsel %vm525, %v407, 0.0
        %v558 = vsel %vm526, %v410, 0.0
        %v559 = vsel %vm527, %v413, 0.0
        %v560 = vsel %vm528, %v416, 0.0
        %v561 = vsel %vm529, %v419, 0.0
        %v562 = vsel %vm530, %v422, 0.0
        %v563 = vsel %vm531, %v425, 0.0
        %v564 = vsel %vm532, %v428, 0.0
        %v565 = vsel %vm533, %v431, 0.0
        %v566 = vsel %vm534, %v434, 0.0
        %vm567 = vcmask 64512
        %568 = vst.msk [vmem:[%s183] sm:$0xff] %vm567, %v535
        %569 = vst.msk [vmem:[%s183 + $0x8] sm:$0xff] %vm567, %v536
        %570 = vst.msk [vmem:[%s183 + $0x10] sm:$0xff] %vm567, %v537
        %571 = vst.msk [vmem:[%s183 + $0x18] sm:$0xff] %vm567, %v538
        %572 = vst.msk [vmem:[%s183 + $0x20] sm:$0xff] %vm567, %v539
        %573 = vst.msk [vmem:[%s183 + $0x28] sm:$0xff] %vm567, %v540
        %574 = vst.msk [vmem:[%s183 + $0x30] sm:$0xff] %vm567, %v541
        %575 = vst.msk [vmem:[%s183 + $0x38] sm:$0xff] %vm567, %v542
        %576 = vst.msk [vmem:[%s183 + $0x40] sm:$0xff] %vm567, %v543
        %577 = vst.msk [vmem:[%s183 + $0x48] sm:$0xff] %vm567, %v544
        %578 = vst.msk [vmem:[%s183 + $0x50] sm:$0xff] %vm567, %v545
        %579 = vst.msk [vmem:[%s183 + $0x58] sm:$0xff] %vm567, %v546
        %580 = vst.msk [vmem:[%s183 + $0x60] sm:$0xff] %vm567, %v547
        %581 = vst.msk [vmem:[%s183 + $0x68] sm:$0xff] %vm567, %v548
        %582 = vst.msk [vmem:[%s183 + $0x70] sm:$0xff] %vm567, %v549
        %583 = vst.msk [vmem:[%s183 + $0x78] sm:$0xff] %vm567, %v550
        %584 = vst.msk [vmem:[%s183 + $0x80] sm:$0xff] %vm567, %v551
        %585 = vst.msk [vmem:[%s183 + $0x88] sm:$0xff] %vm567, %v552
        %586 = vst.msk [vmem:[%s183 + $0x90] sm:$0xff] %vm567, %v553
        %587 = vst.msk [vmem:[%s183 + $0x98] sm:$0xff] %vm567, %v554
        %588 = vst.msk [vmem:[%s183 + $0xa0] sm:$0xff] %vm567, %v555
        %589 = vst.msk [vmem:[%s183 + $0xa8] sm:$0xff] %vm567, %v556
        %590 = vst.msk [vmem:[%s183 + $0xb0] sm:$0xff] %vm567, %v557
        %591 = vst.msk [vmem:[%s183 + $0xb8] sm:$0xff] %vm567, %v558
        %592 = vst.msk [vmem:[%s183 + $0xc0] sm:$0xff] %vm567, %v559
        %593 = vst.msk [vmem:[%s183 + $0xc8] sm:$0xff] %vm567, %v560
        %594 = vst.msk [vmem:[%s183 + $0xd0] sm:$0xff] %vm567, %v561
        %595 = vst.msk [vmem:[%s183 + $0xd8] sm:$0xff] %vm567, %v562
        %596 = vst.msk [vmem:[%s183 + $0xe0] sm:$0xff] %vm567, %v563
        %597 = vst.msk [vmem:[%s183 + $0xe8] sm:$0xff] %vm567, %v564
        %598 = vst.msk [vmem:[%s183 + $0xf0] sm:$0xff] %vm567, %v565
        %599 = vst.msk [vmem:[%s183 + $0xf8] sm:$0xff] %vm567, %v566
        %v600 = vsel %vm567, %v535, 0.0
        %v601 = vsel %vm567, %v536, 0.0
        %v602 = vadd.f32 %v600, %v601
        %v603 = vsel %vm567, %v537, 0.0
        %v604 = vadd.f32 %v602, %v603
        %v605 = vsel %vm567, %v538, 0.0
        %v606 = vadd.f32 %v604, %v605
        %v607 = vsel %vm567, %v539, 0.0
        %v608 = vadd.f32 %v606, %v607
        %v609 = vsel %vm567, %v540, 0.0
        %v610 = vadd.f32 %v608, %v609
        %v611 = vsel %vm567, %v541, 0.0
        %v612 = vadd.f32 %v610, %v611
        %v613 = vsel %vm567, %v542, 0.0
        %v614 = vadd.f32 %v612, %v613
        %v615 = vsel %vm567, %v543, 0.0
        %v616 = vadd.f32 %v614, %v615
        %v617 = vsel %vm567, %v544, 0.0
        %v618 = vadd.f32 %v616, %v617
        %v619 = vsel %vm567, %v545, 0.0
        %v620 = vadd.f32 %v618, %v619
        %v621 = vsel %vm567, %v546, 0.0
        %v622 = vadd.f32 %v620, %v621
        %v623 = vsel %vm567, %v547, 0.0
        %v624 = vadd.f32 %v622, %v623
        %v625 = vsel %vm567, %v548, 0.0
        %v626 = vadd.f32 %v624, %v625
        %v627 = vsel %vm567, %v549, 0.0
        %v628 = vadd.f32 %v626, %v627
        %v629 = vsel %vm567, %v550, 0.0
        %v630 = vadd.f32 %v628, %v629
        %v631 = vsel %vm567, %v551, 0.0
        %v632 = vadd.f32 %v630, %v631
        %v633 = vsel %vm567, %v552, 0.0
        %v634 = vadd.f32 %v632, %v633
        %v635 = vsel %vm567, %v553, 0.0
        %v636 = vadd.f32 %v634, %v635
        %v637 = vsel %vm567, %v554, 0.0
        %v638 = vadd.f32 %v636, %v637
        %v639 = vsel %vm567, %v555, 0.0
        %v640 = vadd.f32 %v638, %v639
        %v641 = vsel %vm567, %v556, 0.0
        %v642 = vadd.f32 %v640, %v641
        %v643 = vsel %vm567, %v557, 0.0
        %v644 = vadd.f32 %v642, %v643
        %v645 = vsel %vm567, %v558, 0.0
        %v646 = vadd.f32 %v644, %v645
        %v647 = vsel %vm567, %v559, 0.0
        %v648 = vadd.f32 %v646, %v647
        %v649 = vsel %vm567, %v560, 0.0
        %v650 = vadd.f32 %v648, %v649
        %v651 = vsel %vm567, %v561, 0.0
        %v652 = vadd.f32 %v650, %v651
        %v653 = vsel %vm567, %v562, 0.0
        %v654 = vadd.f32 %v652, %v653
        %v655 = vsel %vm567, %v563, 0.0
        %v656 = vadd.f32 %v654, %v655
        %v657 = vsel %vm567, %v564, 0.0
        %v658 = vadd.f32 %v656, %v657
        %v659 = vsel %vm567, %v565, 0.0
        %v660 = vadd.f32 %v658, %v659
        %v661 = vsel %vm567, %v566, 0.0
        %v662 = vadd.f32 %v660, %v661
        %v663 = vrot.slane %v662, 4
        %v664 = vadd.f32 %v662, %v663
        %v665 = vrot.slane %v664, 2
        %v666 = vadd.f32 %v664, %v665
        %v667 = vrot.slane %v666, 1
        %v668 = vadd.f32 %v666, %v667
        %v669 = vmul.f32 %v535, %v535
        %v670 = vmul.f32 %v536, %v536
        %v671 = vmul.f32 %v537, %v537
        %v672 = vmul.f32 %v538, %v538
        %v673 = vmul.f32 %v539, %v539
        %v674 = vmul.f32 %v540, %v540
        %v675 = vmul.f32 %v541, %v541
        %v676 = vmul.f32 %v542, %v542
        %v677 = vmul.f32 %v543, %v543
        %v678 = vmul.f32 %v544, %v544
        %v679 = vmul.f32 %v545, %v545
        %v680 = vmul.f32 %v546, %v546
        %v681 = vmul.f32 %v547, %v547
        %v682 = vmul.f32 %v548, %v548
        %v683 = vmul.f32 %v549, %v549
        %v684 = vmul.f32 %v550, %v550
        %v685 = vmul.f32 %v551, %v551
        %v686 = vmul.f32 %v552, %v552
        %v687 = vmul.f32 %v553, %v553
        %v688 = vmul.f32 %v554, %v554
        %v689 = vmul.f32 %v555, %v555
        %v690 = vmul.f32 %v556, %v556
        %v691 = vmul.f32 %v557, %v557
        %v692 = vmul.f32 %v558, %v558
        %v693 = vmul.f32 %v559, %v559
        %v694 = vmul.f32 %v560, %v560
        %v695 = vmul.f32 %v561, %v561
        %v696 = vmul.f32 %v562, %v562
        %v697 = vmul.f32 %v563, %v563
        %v698 = vmul.f32 %v564, %v564
        %v699 = vmul.f32 %v565, %v565
        %v700 = vmul.f32 %v566, %v566
        %v701 = vsel %vm567, %v669, 0.0
        %v702 = vsel %vm567, %v670, 0.0
        %v703 = vadd.f32 %v701, %v702
        %v704 = vsel %vm567, %v671, 0.0
        %v705 = vadd.f32 %v703, %v704
        %v706 = vsel %vm567, %v672, 0.0
        %v707 = vadd.f32 %v705, %v706
        %v708 = vsel %vm567, %v673, 0.0
        %v709 = vadd.f32 %v707, %v708
        %v710 = vsel %vm567, %v674, 0.0
        %v711 = vadd.f32 %v709, %v710
        %v712 = vsel %vm567, %v675, 0.0
        %v713 = vadd.f32 %v711, %v712
        %v714 = vsel %vm567, %v676, 0.0
        %v715 = vadd.f32 %v713, %v714
        %v716 = vsel %vm567, %v677, 0.0
        %v717 = vadd.f32 %v715, %v716
        %v718 = vsel %vm567, %v678, 0.0
        %v719 = vadd.f32 %v717, %v718
        %v720 = vsel %vm567, %v679, 0.0
        %v721 = vadd.f32 %v719, %v720
        %v722 = vsel %vm567, %v680, 0.0
        %v723 = vadd.f32 %v721, %v722
        %v724 = vsel %vm567, %v681, 0.0
        %v725 = vadd.f32 %v723, %v724
        %v726 = vsel %vm567, %v682, 0.0
        %v727 = vadd.f32 %v725, %v726
        %v728 = vsel %vm567, %v683, 0.0
        %v729 = vadd.f32 %v727, %v728
        %v730 = vsel %vm567, %v684, 0.0
        %v731 = vadd.f32 %v729, %v730
        %v732 = vsel %vm567, %v685, 0.0
        %v733 = vadd.f32 %v731, %v732
        %v734 = vsel %vm567, %v686, 0.0
        %v735 = vadd.f32 %v733, %v734
        %v736 = vsel %vm567, %v687, 0.0
        %v737 = vadd.f32 %v735, %v736
        %v738 = vsel %vm567, %v688, 0.0
        %v739 = vadd.f32 %v737, %v738
        %v740 = vsel %vm567, %v689, 0.0
        %v741 = vadd.f32 %v739, %v740
        %v742 = vsel %vm567, %v690, 0.0
        %v743 = vadd.f32 %v741, %v742
        %v744 = vsel %vm567, %v691, 0.0
        %v745 = vadd.f32 %v743, %v744
        %v746 = vsel %vm567, %v692, 0.0
        %v747 = vadd.f32 %v745, %v746
        %v748 = vsel %vm567, %v693, 0.0
        %v749 = vadd.f32 %v747, %v748
        %v750 = vsel %vm567, %v694, 0.0
        %v751 = vadd.f32 %v749, %v750
        %v752 = vsel %vm567, %v695, 0.0
        %v753 = vadd.f32 %v751, %v752
        %v754 = vsel %vm567, %v696, 0.0
        %v755 = vadd.f32 %v753, %v754
        %v756 = vsel %vm567, %v697, 0.0
        %v757 = vadd.f32 %v755, %v756
        %v758 = vsel %vm567, %v698, 0.0
        %v759 = vadd.f32 %v757, %v758
        %v760 = vsel %vm567, %v699, 0.0
        %v761 = vadd.f32 %v759, %v760
        %v762 = vsel %vm567, %v700, 0.0
        %v763 = vadd.f32 %v761, %v762
        %v764 = vrot.slane %v763, 4
        %v765 = vadd.f32 %v763, %v764
        %v766 = vrot.slane %v765, 2
        %v767 = vadd.f32 %v765, %v766
        %v768 = vrot.slane %v767, 1
        %v769 = vadd.f32 %v767, %v768
        %vm770 = vcmask 1040384
        %v771 = vsel %vm770, %v668, %v769
        %vm772 = vcmask 58368
        %773 = vst.msk [vmem:[%s172] sm:$0x3] %vm772, %v771
        %s774 = smul.u32 32, %s18
        %p775 = scmp.lt.s32.totalorder %s774, 63
        %s776 = scalar_select %p775, %s774, 63
        %s777 = smul.addr %s776, 8
        %s778 = scalar_lea.vmem %s2, %s777
        %s779 = sand.u32 %s99, 1
        %s780 = scalar_lea.sflag [#allocation3], %s779
        %s781 = sand.u32 %s99, 1
        %s782 = smul.addr %s781, 2
        %s783 = scalar_lea.vmem [#allocation2], %s782
        // Predicated region
        $region29: #{tpu_custom_call.1} parent=27 // pred_check
          %p784 = pneg %p83
        $region30: #{tpu_custom_call.1} parent=27 // pred_check_branch
          %786 = sbr.rel (%p784) target = $region32
        $region31: #{tpu_custom_call.1} parent=27 // pred_region
          %s787 = smul.u32 32, %s18
        $region32: #{tpu_custom_call.1} parent=27 // pred_fallthru
          _
        // Predicated region
        $region33: #{tpu_custom_call.1} parent=27 // pred_check
          %p788 = pneg %p109
        $region34: #{tpu_custom_call.1} parent=27 // pred_check_branch
          %790 = sbr.rel (%p788) target = $region36
        $region35: #{tpu_custom_call.1} parent=27 // pred_region
          %792 = vsyncadd %s780, 0
          %s793 = smul.addr %s18, 2
          %s794 = scalar_lea.hbm %s3, %s793
          %s796 = sshll.u32 %s783, 4
          %s797 = int_to_ptr.vmem [resolvable:$true] %s796
          %s798 = sshll.u32 %s794, 4
          %s799 = int_to_ptr.hbm [resolvable:$true] %s798
          %801 = dma.vmem_to_hbm [thread:$0]  %s797, 32, %s799, %s780
        $region36: #{tpu_custom_call.1} parent=27 // pred_fallthru
          _
      $region28: #{tpu_custom_call.1} parent=5 // pred_fallthru
        _
      %p802 = scmp.le.s32.totalorder 2, %s13
      // Predicated region
      $region37: #{tpu_custom_call.1} parent=5 // pred_check
        %p803 = pneg %p802
      $region38: #{tpu_custom_call.1} parent=5 // pred_check_branch
        %805 = sbr.rel (%p803) target = $region40
      $region39: #{tpu_custom_call.1} parent=5 // pred_region
        %s806 = ssub.s32 %s13, 2
        // Predicated region
        $region41: #{tpu_custom_call.1} parent=39 // pred_check
          %p807 = pneg %p89
        $region42: #{tpu_custom_call.1} parent=39 // pred_check_branch
          %809 = sbr.rel (%p807) target = $region44
        $region43: #{tpu_custom_call.1} parent=39 // pred_region
          %s810 = smul.u32 32, %s19
          %p811 = scmp.lt.s32.totalorder %s810, 63
          %s812 = scalar_select %p811, %s810, 63
          %s813 = smul.addr %s812, 8
          %s814 = scalar_lea.vmem %s2, %s813
        $region44: #{tpu_custom_call.1} parent=39 // pred_fallthru
          _
        // Predicated region
        $region45: #{tpu_custom_call.1} parent=39 // pred_check
          %p815 = pneg %p115
        $region46: #{tpu_custom_call.1} parent=39 // pred_check_branch
          %817 = sbr.rel (%p815) target = $region48
        $region47: #{tpu_custom_call.1} parent=39 // pred_region
          %s818 = sand.u32 %s100, 1
          %s819 = scalar_lea.sflag [#allocation3], %s818
          %s820 = sand.u32 %s100, 1
          %s821 = smul.addr %s820, 2
          %s822 = scalar_lea.vmem [#allocation2], %s821
          %824 = dma.done %s819, 32
        $region48: #{tpu_custom_call.1} parent=39 // pred_fallthru
          _
      $region40: #{tpu_custom_call.1} parent=5 // pred_fallthru
        _
    $region6: #{tpu_custom_call.1} parent=1 // loop_footer
      %s17 = sadd.s32 1, %s13
    $region7: #{tpu_custom_call.1} parent=1 // loop_footer_branch
      %12 = sbr.rel target = $region3
    $region8: #{tpu_custom_call.1} parent=1 // loop_exit
      _
    %825 = vsyncpa [#allocation3], 1
    %s826 = scalar_lea.sflag [#allocation3], 1
    %827 = vsyncpa %s826, 1

</llo_original>
